<compile_context>
chip_gen: v7x
topology: tpu7x:2x2x1
jax: 0.10.0
libtpu: 0.0.40
codegen_flags: <defaults>
</compile_context>

<pallas_src>
import functools

import jax
import jax.numpy as jnp
from jax import lax
from jax.experimental import pallas as pl
from jax.experimental.pallas import tpu as pltpu


def _self_attention_kernel(x_ref, xq_ref, wq_ref, bq_ref, wk_ref, bk_ref,
                           wv_ref, bv_ref, o_ref, *, use_bf16_exp):
    """One (batch element, query tile) step.

    x_ref:  (1, C, L)   full sequence (keys / values source), NCL, f32
    xq_ref: (1, C, Tq)  query-tile columns of the same x
    o_ref:  (1, C, Tq)  output tile (lane-dense along L)
    wq/wk:  (A, C) bf16, wv: (C, C) bf16;  bq/bk: (A, 1) f32, bv: (C, 1) f32
    """
    x_bf = x_ref[0].astype(jnp.bfloat16)           # (C, L)
    xq_bf = xq_ref[0].astype(jnp.bfloat16)         # (C, Tq)

    # Pointwise Conv1d projections, channels-first (lane-dense along L).
    qT = jnp.dot(wq_ref[...], xq_bf,
                 preferred_element_type=jnp.float32) + bq_ref[...]      # (A, Tq)
    kT = jnp.dot(wk_ref[...], x_bf,
                 preferred_element_type=jnp.float32) + bk_ref[...]      # (A, L)

    # s[t, m] = sum_a qT[a, t] * kT[a, m]   (trans-LHS matmul, MXU-native).
    s = lax.dot_general(qT.astype(jnp.bfloat16), kT.astype(jnp.bfloat16),
                        (((0,), (0,)), ((), ())),
                        preferred_element_type=jnp.float32)             # (Tq, L)

    # Numerically-stable softmax numerator (max + subtraction in f32);
    # normalization is deferred until after the AV matmul.
    s = s - jnp.max(s, axis=-1, keepdims=True)
    if use_bf16_exp:
        p_bf = jnp.exp(s.astype(jnp.bfloat16))      # bf16 EUP path (v6e / v7x)
    else:
        p_bf = jnp.exp(s).astype(jnp.bfloat16)      # f32 EUP (v5e and older)

    # Value projection WITHOUT bias; the bias is added after normalization
    # (exact: sum_m p[t,m] * bv[c] / row_sum[t] == bv[c]).
    vx = jnp.dot(wv_ref[...], x_bf, preferred_element_type=jnp.float32)  # (C, L)

    # av[c, t]      = sum_m vx[c, m] * p[t, m]
    # row_sum[0, t] = sum_m p[t, m]   (row sums land on the lane axis, f32
    #                                  accumulation on the idle MXU)
    av = lax.dot_general(vx.astype(jnp.bfloat16), p_bf,
                         (((1,), (1,)), ((), ())),
                         preferred_element_type=jnp.float32)             # (C, Tq)
    ones_row = jnp.ones((1, x_bf.shape[1]), jnp.bfloat16)
    row_sum = lax.dot_general(ones_row, p_bf, (((1,), (1,)), ((), ())),
                              preferred_element_type=jnp.float32)        # (1, Tq)

    inv = pl.reciprocal(row_sum, approx=True)                            # (1, Tq)
    # Residual: re-read the f32 query tile here (keeps live ranges short).
    o_ref[0] = (xq_ref[0] + av * inv + bv_ref[...]).astype(o_ref.dtype)


def _pick_query_tile(L, max_tq=512):
    if L <= max_tq:
        return L
    for t in (512, 384, 256, 128):
        if L % t == 0:
            return t
    return L   # untiled fallback (still correct, just larger VMEM footprint)


def _device_kind():
    try:
        return jax.devices()[0].device_kind.lower()
    except Exception:
        return ""


def self_attention_1d(x_ncl, wq, bq, wk, bk, wv, bv, *, max_query_tile=512,
                      use_bf16_exp=None):
    """SelfAttention1D forward.

    x_ncl: (B, C, L) float32, PyTorch NCL layout.
    wq, wk: (A, C) and wv: (C, C) -- Conv1d(kernel=1) weights in (out, in) layout.
    bq, bk: (A,); bv: (C,).
    Returns (B, C, L).
    """
    B, C, L = x_ncl.shape
    A = wq.shape[0]

    tq = _pick_query_tile(L, max_query_tile)
    assert L % tq == 0
    nq = L // tq
    grid = (B, nq)

    kind = _device_kind()
    if use_bf16_exp is None:
        # bf16 EUP only exists on v6e / v7x; keep f32 exp elsewhere (v5e, ...).
        use_bf16_exp = any(t in kind for t in ("v6", "v7", "7x"))
    is_v7x = ("v7" in kind) or ("7x" in kind)

    # Grid-invariant pre-arrangement: weights to bf16 once, biases stay f32.
    wq_bf = wq.astype(jnp.bfloat16)                  # (A, C)
    wk_bf = wk.astype(jnp.bfloat16)                  # (A, C)
    wv_bf = wv.astype(jnp.bfloat16)                  # (C, C)
    bq2 = bq.reshape(A, 1).astype(jnp.float32)
    bk2 = bk.reshape(A, 1).astype(jnp.float32)
    bv2 = bv.reshape(C, 1).astype(jnp.float32)

    # Scoped-VMEM budget: score/prob tile + projections + double-buffered I/O.
    step_bytes = (tq * L * 6                         # s f32 + p bf16
                  + (2 * A + 2 * C) * L * 4          # qT / kT / vx f32 (+ bf16 copies)
                  + 4 * C * (L + 2 * tq) * 4)        # x / xq / out (double-buffered)
    vmem_cap = (60 << 20) if is_v7x else (110 << 20)
    vmem_limit = min(max(int(1.5 * step_bytes) + (4 << 20), 16 << 20), vmem_cap)

    cost = pl.CostEstimate(
        flops=int(2 * B * L * L * (A + C + 1)
                  + 2 * B * nq * L * (2 * A * C + C * C)),
        transcendentals=int(B * L * L),
        bytes_accessed=int(2 * B * C * L * 4 + (2 * A * C + C * C) * 2 + 4 * (2 * A + C)),
    )

    grid_spec = pltpu.PrefetchScalarGridSpec(
        num_scalar_prefetch=0,
        grid=grid,
        in_specs=[
            pl.BlockSpec((1, C, L), lambda b, q: (b, 0, 0)),    # x, full sequence
            pl.BlockSpec((1, C, tq), lambda b, q: (b, 0, q)),   # x, query tile
            pl.BlockSpec((A, C), lambda b, q: (0, 0)),          # Wq (bf16)
            pl.BlockSpec((A, 1), lambda b, q: (0, 0)),          # bq (f32)
            pl.BlockSpec((A, C), lambda b, q: (0, 0)),          # Wk (bf16)
            pl.BlockSpec((A, 1), lambda b, q: (0, 0)),          # bk (f32)
            pl.BlockSpec((C, C), lambda b, q: (0, 0)),          # Wv (bf16)
            pl.BlockSpec((C, 1), lambda b, q: (0, 0)),          # bv (f32)
        ],
        out_specs=pl.BlockSpec((1, C, tq), lambda b, q: (b, 0, q)),
    )

    kernel = functools.partial(_self_attention_kernel, use_bf16_exp=use_bf16_exp)

    return pl.pallas_call(
        kernel,
        out_shape=jax.ShapeDtypeStruct((B, C, L), x_ncl.dtype),
        grid_spec=grid_spec,
        compiler_params=pltpu.CompilerParams(
            dimension_semantics=("parallel", "parallel"),
            vmem_limit_bytes=vmem_limit),
        cost_estimate=cost,
    )(x_ncl, x_ncl, wq_bf, bq2, wk_bf, bk2, wv_bf, bv2)


def _reference(x, wq, bq, wk, bk, wv, bv):
    # Pure-JAX reference reproducing the PyTorch forward (NCL, (out, in) weights).
    q = jnp.einsum('oc,bcl->bol', wq, x) + bq[None, :, None]       # (B, A, L)
    k = jnp.einsum('oc,bcl->bol', wk, x) + bk[None, :, None]       # (B, A, L)
    v = jnp.einsum('oc,bcl->bol', wv, x) + bv[None, :, None]       # (B, C, L)
    s = jnp.einsum('bal,bam->blm', q, k)                           # (B, L, L)
    p = jax.nn.softmax(s, axis=-1)
    o = jnp.einsum('blm,bcm->bcl', p, v)                           # (B, C, L)
    return x + o


if __name__ == "__main__":
    B, C, L = 4, 8, 128     # batch, in_channels, sequence length (L lane-dense)
    A = 16                  # attention_size

    key = jax.random.PRNGKey(0)
    kx, k1, k2, k3, k4, k5, k6 = jax.random.split(key, 7)

    x = jax.random.normal(kx, (B, C, L), dtype=jnp.float32)

    # Conv1d(kernel=1) weights in PyTorch (out_channels, in_channels) layout.
    wq = 0.1 * jax.random.normal(k1, (A, C), dtype=jnp.float32)
    bq = 0.1 * jax.random.normal(k2, (A,), dtype=jnp.float32)
    wk = 0.1 * jax.random.normal(k3, (A, C), dtype=jnp.float32)
    bk = 0.1 * jax.random.normal(k4, (A,), dtype=jnp.float32)
    wv = 0.1 * jax.random.normal(k5, (C, C), dtype=jnp.float32)
    bv = 0.1 * jax.random.normal(k6, (C,), dtype=jnp.float32)

    y = self_attention_1d(x, wq, bq, wk, bk, wv, bv)
    jax.block_until_ready(y)

    y_ref = _reference(x, wq, bq, wk, bk, wv, bv)
    assert y.shape == (B, C, L)
    # bf16 MXU operands / bf16 probs / approx reciprocal (f32 accumulation)
    # -> slightly looser tolerance than pure f32.
    max_diff = float(jnp.max(jnp.abs(y - y_ref)))
    assert jnp.allclose(y, y_ref, atol=2e-2, rtol=2e-2), (
        f"mismatch vs reference; max abs diff = {max_diff}")

    print("KERNEL_OK")
</pallas_src>

<mosaic_0001>
module attributes {stable_mosaic.version = 11 : i64} {
  func.func @_self_attention_kernel(%arg0: i32, %arg1: i32, %arg2: memref<1x8x128xf32, #tpu.memory_space<vmem>>, %arg3: memref<1x8x128xf32, #tpu.memory_space<vmem>>, %arg4: memref<16x8xbf16, #tpu.memory_space<vmem>>, %arg5: memref<16x1xf32, #tpu.memory_space<vmem>>, %arg6: memref<16x8xbf16, #tpu.memory_space<vmem>>, %arg7: memref<16x1xf32, #tpu.memory_space<vmem>>, %arg8: memref<8x8xbf16, #tpu.memory_space<vmem>>, %arg9: memref<8x1xf32, #tpu.memory_space<vmem>>, %arg10: memref<1x8x128xf32, #tpu.memory_space<vmem>>) attributes {dimension_semantics = [#tpu.dimension_semantics<parallel>, #tpu.dimension_semantics<parallel>], iteration_bounds = array<i64: 4, 1>, scalar_prefetch = 0 : i64, scratch_operands = 0 : i64, tpu.core_type = #tpu.core_type<tc>, window_params = [{transform_indices = @transform_0, window_bounds = array<i64: 1, 8, 128>}, {transform_indices = @transform_1, window_bounds = array<i64: 1, 8, 128>}, {pipeline_mode = #tpu.pipeline_mode<synchronous>, transform_indices = @transform_2, window_bounds = array<i64: 16, 8>}, {pipeline_mode = #tpu.pipeline_mode<synchronous>, transform_indices = @transform_3, window_bounds = array<i64: 16, 1>}, {pipeline_mode = #tpu.pipeline_mode<synchronous>, transform_indices = @transform_4, window_bounds = array<i64: 16, 8>}, {pipeline_mode = #tpu.pipeline_mode<synchronous>, transform_indices = @transform_5, window_bounds = array<i64: 16, 1>}, {pipeline_mode = #tpu.pipeline_mode<synchronous>, transform_indices = @transform_6, window_bounds = array<i64: 8, 8>}, {pipeline_mode = #tpu.pipeline_mode<synchronous>, transform_indices = @transform_7, window_bounds = array<i64: 8, 1>}, {transform_indices = @transform_8, window_bounds = array<i64: 1, 8, 128>}]} {
    %c0 = arith.constant 0 : index
    %c0_0 = arith.constant 0 : index
    %c0_1 = arith.constant 0 : index
    %0 = vector.load %arg2[%c0, %c0_0, %c0_1] : memref<1x8x128xf32, #tpu.memory_space<vmem>>, vector<1x8x128xf32>
    %1 = vector.shape_cast %0 : vector<1x8x128xf32> to vector<8x128xf32>
    %2 = arith.truncf %1 : vector<8x128xf32> to vector<8x128xbf16>
    %c0_2 = arith.constant 0 : index
    %c0_3 = arith.constant 0 : index
    %c0_4 = arith.constant 0 : index
    %3 = vector.load %arg3[%c0_2, %c0_3, %c0_4] : memref<1x8x128xf32, #tpu.memory_space<vmem>>, vector<1x8x128xf32>
    %4 = vector.shape_cast %3 : vector<1x8x128xf32> to vector<8x128xf32>
    %5 = arith.truncf %4 : vector<8x128xf32> to vector<8x128xbf16>
    %c0_5 = arith.constant 0 : index
    %c0_6 = arith.constant 0 : index
    %6 = vector.load %arg4[%c0_5, %c0_6] : memref<16x8xbf16, #tpu.memory_space<vmem>>, vector<16x8xbf16>
    %cst = arith.constant dense<0.000000e+00> : vector<16x128xf32>
    %7 = tpu.matmul %6, %5, %cst {dimension_numbers = #tpu.dot_dimension_numbers<[1], [0], [0], [1], [0, 0, 1, 1], [], []>} : vector<16x8xbf16>, vector<8x128xbf16>, vector<16x128xf32> -> vector<16x128xf32>
    %c0_7 = arith.constant 0 : index
    %c0_8 = arith.constant 0 : index
    %8 = vector.load %arg5[%c0_7, %c0_8] : memref<16x1xf32, #tpu.memory_space<vmem>>, vector<16x1xf32>
    %9 = vector.broadcast %8 : vector<16x1xf32> to vector<16x128xf32>
    %10 = arith.addf %7, %9 : vector<16x128xf32>
    %c0_9 = arith.constant 0 : index
    %c0_10 = arith.constant 0 : index
    %11 = vector.load %arg6[%c0_9, %c0_10] : memref<16x8xbf16, #tpu.memory_space<vmem>>, vector<16x8xbf16>
    %cst_11 = arith.constant dense<0.000000e+00> : vector<16x128xf32>
    %12 = tpu.matmul %11, %2, %cst_11 {dimension_numbers = #tpu.dot_dimension_numbers<[1], [0], [0], [1], [0, 0, 1, 1], [], []>} : vector<16x8xbf16>, vector<8x128xbf16>, vector<16x128xf32> -> vector<16x128xf32>
    %c0_12 = arith.constant 0 : index
    %c0_13 = arith.constant 0 : index
    %13 = vector.load %arg7[%c0_12, %c0_13] : memref<16x1xf32, #tpu.memory_space<vmem>>, vector<16x1xf32>
    %14 = vector.broadcast %13 : vector<16x1xf32> to vector<16x128xf32>
    %15 = arith.addf %12, %14 : vector<16x128xf32>
    %16 = arith.truncf %10 : vector<16x128xf32> to vector<16x128xbf16>
    %17 = arith.truncf %15 : vector<16x128xf32> to vector<16x128xbf16>
    %cst_14 = arith.constant dense<0.000000e+00> : vector<128x128xf32>
    %18 = tpu.matmul %16, %17, %cst_14 {dimension_numbers = #tpu.dot_dimension_numbers<[0], [0], [1], [1], [0, 1, 1, 1], [], []>} : vector<16x128xbf16>, vector<16x128xbf16>, vector<128x128xf32> -> vector<128x128xf32>
    %cst_15 = arith.constant dense<0xFF800000> : vector<128xf32>
    %19 = vector.multi_reduction <maximumf>, %18, %cst_15 [1] : vector<128x128xf32> to vector<128xf32>
    %20 = vector.shape_cast %19 : vector<128xf32> to vector<128x1xf32>
    %21 = vector.broadcast %20 : vector<128x1xf32> to vector<128x128xf32>
    %22 = arith.subf %18, %21 : vector<128x128xf32>
    %23 = math.exp %22 : vector<128x128xf32>
    %24 = arith.truncf %23 : vector<128x128xf32> to vector<128x128xbf16>
    %c0_16 = arith.constant 0 : index
    %c0_17 = arith.constant 0 : index
    %25 = vector.load %arg8[%c0_16, %c0_17] : memref<8x8xbf16, #tpu.memory_space<vmem>>, vector<8x8xbf16>
    %cst_18 = arith.constant dense<0.000000e+00> : vector<8x128xf32>
    %26 = tpu.matmul %25, %2, %cst_18 {dimension_numbers = #tpu.dot_dimension_numbers<[1], [0], [0], [1], [0, 0, 1, 1], [], []>} : vector<8x8xbf16>, vector<8x128xbf16>, vector<8x128xf32> -> vector<8x128xf32>
    %27 = arith.truncf %26 : vector<8x128xf32> to vector<8x128xbf16>
    %cst_19 = arith.constant dense<0.000000e+00> : vector<8x128xf32>
    %28 = tpu.matmul %27, %24, %cst_19 {dimension_numbers = #tpu.dot_dimension_numbers<[1], [1], [0], [0], [0, 0, 1, 0], [], []>} : vector<8x128xbf16>, vector<128x128xbf16>, vector<8x128xf32> -> vector<8x128xf32>
    %cst_20 = arith.constant 1.000000e+00 : bf16
    %29 = vector.broadcast %cst_20 : bf16 to vector<1x128xbf16>
    %cst_21 = arith.constant dense<0.000000e+00> : vector<1x128xf32>
    %30 = tpu.matmul %29, %24, %cst_21 {dimension_numbers = #tpu.dot_dimension_numbers<[1], [1], [0], [0], [0, 0, 1, 0], [], []>} : vector<1x128xbf16>, vector<128x128xbf16>, vector<1x128xf32> -> vector<1x128xf32>
    %31 = tpu.reciprocal %30 {approx = true} : vector<1x128xf32> -> vector<1x128xf32>
    %c0_22 = arith.constant 0 : index
    %c0_23 = arith.constant 0 : index
    %c0_24 = arith.constant 0 : index
    %32 = vector.load %arg3[%c0_22, %c0_23, %c0_24] : memref<1x8x128xf32, #tpu.memory_space<vmem>>, vector<1x8x128xf32>
    %33 = vector.shape_cast %32 : vector<1x8x128xf32> to vector<8x128xf32>
    %34 = vector.broadcast %31 : vector<1x128xf32> to vector<8x128xf32>
    %35 = arith.mulf %28, %34 : vector<8x128xf32>
    %36 = arith.addf %33, %35 : vector<8x128xf32>
    %c0_25 = arith.constant 0 : index
    %c0_26 = arith.constant 0 : index
    %37 = vector.load %arg9[%c0_25, %c0_26] : memref<8x1xf32, #tpu.memory_space<vmem>>, vector<8x1xf32>
    %38 = vector.broadcast %37 : vector<8x1xf32> to vector<8x128xf32>
    %39 = arith.addf %36, %38 : vector<8x128xf32>
    %c0_27 = arith.constant 0 : index
    %c0_28 = arith.constant 0 : index
    %c0_29 = arith.constant 0 : index
    %40 = vector.load %arg10[%c0_27, %c0_28, %c0_29] : memref<1x8x128xf32, #tpu.memory_space<vmem>>, vector<1x8x128xf32>
    %41 = vector.shape_cast %40 : vector<1x8x128xf32> to vector<8x128xf32>
    %42 = vector.shape_cast %39 : vector<8x128xf32> to vector<1x8x128xf32>
    tpu.vector_store %arg10[%c0_27, %c0_28, %c0_29], %42 {strides = array<i32>} : memref<1x8x128xf32, #tpu.memory_space<vmem>>, vector<1x8x128xf32>,
    return
  }
  func.func @transform_0(%arg0: i32, %arg1: i32) -> (i32, i32, i32) {
    %c0_i32 = arith.constant 0 : i32
    %c0_i32_0 = arith.constant 0 : i32
    %c0_i32_1 = arith.constant 0 : i32
    return %arg0, %c0_i32, %c0_i32_0 : i32, i32, i32
  }
  func.func @transform_1(%arg0: i32, %arg1: i32) -> (i32, i32, i32) {
    %c0_i32 = arith.constant 0 : i32
    %c0_i32_0 = arith.constant 0 : i32
    return %arg0, %c0_i32, %arg1 : i32, i32, i32
  }
  func.func @transform_2(%arg0: i32, %arg1: i32) -> (i32, i32) {
    %c0_i32 = arith.constant 0 : i32
    %c0_i32_0 = arith.constant 0 : i32
    %c0_i32_1 = arith.constant 0 : i32
    return %c0_i32, %c0_i32_0 : i32, i32
  }
  func.func @transform_3(%arg0: i32, %arg1: i32) -> (i32, i32) {
    %c0_i32 = arith.constant 0 : i32
    %c0_i32_0 = arith.constant 0 : i32
    %c0_i32_1 = arith.constant 0 : i32
    return %c0_i32, %c0_i32_0 : i32, i32
  }
  func.func @transform_4(%arg0: i32, %arg1: i32) -> (i32, i32) {
    %c0_i32 = arith.constant 0 : i32
    %c0_i32_0 = arith.constant 0 : i32
    %c0_i32_1 = arith.constant 0 : i32
    return %c0_i32, %c0_i32_0 : i32, i32
  }
  func.func @transform_5(%arg0: i32, %arg1: i32) -> (i32, i32) {
    %c0_i32 = arith.constant 0 : i32
    %c0_i32_0 = arith.constant 0 : i32
    %c0_i32_1 = arith.constant 0 : i32
    return %c0_i32, %c0_i32_0 : i32, i32
  }
  func.func @transform_6(%arg0: i32, %arg1: i32) -> (i32, i32) {
    %c0_i32 = arith.constant 0 : i32
    %c0_i32_0 = arith.constant 0 : i32
    %c0_i32_1 = arith.constant 0 : i32
    return %c0_i32, %c0_i32_0 : i32, i32
  }
  func.func @transform_7(%arg0: i32, %arg1: i32) -> (i32, i32) {
    %c0_i32 = arith.constant 0 : i32
    %c0_i32_0 = arith.constant 0 : i32
    %c0_i32_1 = arith.constant 0 : i32
    return %c0_i32, %c0_i32_0 : i32, i32
  }
  func.func @transform_8(%arg0: i32, %arg1: i32) -> (i32, i32, i32) {
    %c0_i32 = arith.constant 0 : i32
    %c0_i32_0 = arith.constant 0 : i32
    return %arg0, %c0_i32, %arg1 : i32, i32, i32
  }
}

</mosaic_0001>

<llo_original>
// kernel: tpu_custom_call.1
$region0: #{tpu_custom_call.1}
  #allocation0 [shape = 'u32[]', space=smem, size = 0x4, offset = 0x4, fixed_abs, tag = 'smem constant byte address 0x4 - core index']
  #allocation1 [shape = 'u32[144,128]{1,0:T(1,128)}', space=vmem, size = 0x12000, scoped, tag = 'internal scratch']
  %s0 = inlined_call_operand.vmem [shape: f32[4,8,128], index: 0, kind: input, shape index: {}]
  %s1 = inlined_call_operand.hbm [shape: f32[4,8,128], index: 1, kind: input, shape index: {}]
  %s2 = inlined_call_operand.vmem [shape: bf16[16,8], index: 2, kind: input, shape index: {}]
  %s3 = inlined_call_operand.vmem [shape: f32[16,1], index: 3, kind: input, shape index: {}]
  %s4 = inlined_call_operand.vmem [shape: bf16[16,8], index: 4, kind: input, shape index: {}]
  %s5 = inlined_call_operand.vmem [shape: f32[16,1], index: 5, kind: input, shape index: {}]
  %s6 = inlined_call_operand.vmem [shape: bf16[8,8], index: 6, kind: input, shape index: {}]
  %s7 = inlined_call_operand.vmem [shape: f32[8,1], index: 7, kind: input, shape index: {}]
  %s8 = inlined_call_operand.hbm [shape: f32[4,8,128], index: 8, kind: output, shape index: {}]
  %s9 = sld [smem:[#allocation0]]
  $region69: #{tpu_custom_call.1} parent=0
    _
  %s11 = ssub.s32 1, %s9
  %s12 = scalar_select 0, %s11, %s9
  $region1: #{tpu_custom_call.1} parent=0
    #allocation2 [shape = 'u8[8192]{0}', space=vmem, size = 0x2000, scoped, tag = 'input window, operand 1']
    #allocation3 [shape = 's32[2]{0}', space=sflag, size = 0x8, scoped, tag = 'scoped memory for tpu_custom_call.1']
    #allocation4 [shape = 's32[2]{0}', space=sflag, size = 0x8, scoped, tag = 'scoped memory for tpu_custom_call.1']
    #allocation5 [shape = 'u8[8192]{0}', space=vmem, size = 0x2000, scoped, tag = 'output window, operand 0']
    %13 = vsyncpa [#allocation3], 0
    %s14 = scalar_lea.sflag [#allocation3], 1
    %15 = vsyncpa %s14, 0
    %16 = vsyncpa [#allocation4], 0
    %s17 = scalar_lea.sflag [#allocation4], 1
    %18 = vsyncpa %s17, 0
    loop: start=0, step=1, limit=6
    $region2: #{tpu_custom_call.1} parent=1 // loop_pre_header
      _
    $region3: #{tpu_custom_call.1} parent=1 // loop_header
      %s20 = sphi 0, %s24
      %p21 = scmp.ge.s32.totalorder %s20, 6
      %s27 = sphi 0, %s39
      %s28 = sphi 0, %s35
      %s29 = sphi 0, %s27
      %s30 = sphi 0, %s28
      %s31 = sphi 0, %s29
      %s32 = sphi 0, %s30
      %s42 = sphi 0, %s44
      %s45 = sphi 0, %s42
      %s46 = sphi 0, %s45
      %s62 = sphi 0, %s46
      %s70 = sphi 0, %s72
      %s73 = sphi 0, %s70
      %s74 = sphi 0, %s73
      %s90 = sphi 0, %s74
      %s94 = sphi 0, %s94
      %s96 = sphi 0, %s94
      %s97 = sphi 0, %s96
      %s111 = sphi 0, %s97
      %s115 = sphi 0, %s115
      %s117 = sphi 0, %s115
      %s118 = sphi 0, %s117
      %s132 = sphi 0, %s118
      %s136 = sphi 0, %s136
      %s138 = sphi 0, %s136
      %s139 = sphi 0, %s138
      %s153 = sphi 0, %s139
      %s157 = sphi 0, %s157
      %s159 = sphi 0, %s157
      %s160 = sphi 0, %s159
      %s174 = sphi 0, %s160
      %s178 = sphi 0, %s178
      %s180 = sphi 0, %s178
      %s181 = sphi 0, %s180
      %s195 = sphi 0, %s181
      %s199 = sphi 0, %s199
      %s201 = sphi 0, %s199
      %s202 = sphi 0, %s201
      %s216 = sphi 0, %s202
      %s224 = sphi 0, %s226
      %s227 = sphi 0, %s224
      %s228 = sphi 0, %s227
      %s244 = sphi 0, %s228
    $region4: #{tpu_custom_call.1} parent=1 // loop_header_branch
      %23 = sbr.rel (%p21) target = $region8
    $region5: #{tpu_custom_call.1} parent=1 // loop_body
      %s25 = ssub.s32 %s20, 1
      %s26 = ssub.s32 %s20, 2
      %s33 = sadd.s32 1, %s28
      %p34 = scmp.ge.s32.totalorder %s33, 1
      %s35 = scalar_select %p34, 0, %s33
      %s36 = sadd.s32 1, %s27
      %s37 = scalar_select %p34, %s36, %s27
      %p38 = scmp.ge.s32.totalorder %s37, 4
      %s39 = scalar_select %p38, 0, %s37
      %s40 = ssub.s32 %s27, %s39
      %p41 = scmp.eq.s32.totalorder %s40, 0
      %s43 = sadd.s32 %s42, 1
      %s44 = scalar_select %p41, %s42, %s43
      %p47 = pneg %p41
      %p48 = scmp.eq.s32.totalorder %s20, 3
      %p49 = por %p47, %p48
      %p50 = scmp.ne.s32.totalorder %s42, %s45
      %p51 = scmp.eq.s32.totalorder %s20, 0
      %p52 = por %p50, %p51
      %p53 = scmp.ne.s32.totalorder %s42, %s45
      %p54 = scmp.eq.s32.totalorder %s25, 3
      %p55 = por %p53, %p54
      %p56 = scmp.ne.s32.totalorder %s45, %s46
      %p57 = scmp.eq.s32.totalorder %s25, 0
      %p58 = por %p56, %p57
      %p59 = scmp.ne.s32.totalorder %s45, %s46
      %p60 = scmp.eq.s32.totalorder %s26, 3
      %p61 = por %p59, %p60
      %p63 = scmp.ne.s32.totalorder %s46, %s62
      %p64 = scmp.eq.s32.totalorder %s26, 0
      %p65 = por %p63, %p64
      %s66 = ssub.s32 %s27, %s39
      %s67 = ssub.s32 %s28, %s35
      %s68 = sor.u32 %s66, %s67
      %p69 = scmp.eq.s32.totalorder %s68, 0
      %s71 = sadd.s32 %s70, 1
      %s72 = scalar_select %p69, %s70, %s71
      %p75 = pneg %p69
      %p76 = scmp.eq.s32.totalorder %s20, 3
      %p77 = por %p75, %p76
      %p78 = scmp.ne.s32.totalorder %s70, %s73
      %p79 = scmp.eq.s32.totalorder %s20, 0
      %p80 = por %p78, %p79
      %p81 = scmp.ne.s32.totalorder %s70, %s73
      %p82 = scmp.eq.s32.totalorder %s25, 3
      %p83 = por %p81, %p82
      %p84 = scmp.ne.s32.totalorder %s73, %s74
      %p85 = scmp.eq.s32.totalorder %s25, 0
      %p86 = por %p84, %p85
      %p87 = scmp.ne.s32.totalorder %s73, %s74
      %p88 = scmp.eq.s32.totalorder %s26, 3
      %p89 = por %p87, %p88
      %p91 = scmp.ne.s32.totalorder %s74, %s90
      %p92 = scmp.eq.s32.totalorder %s26, 0
      %p93 = por %p91, %p92
      %s95 = sadd.s32 %s94, 1
      %p98 = scmp.eq.s32.totalorder %s20, 3
      %p99 = scmp.ne.s32.totalorder %s94, %s96
      %p100 = scmp.eq.s32.totalorder %s20, 0
      %p101 = por %p99, %p100
      %p102 = scmp.ne.s32.totalorder %s94, %s96
      %p103 = scmp.eq.s32.totalorder %s25, 3
      %p104 = por %p102, %p103
      %p105 = scmp.ne.s32.totalorder %s96, %s97
      %p106 = scmp.eq.s32.totalorder %s25, 0
      %p107 = por %p105, %p106
      %p108 = scmp.ne.s32.totalorder %s96, %s97
      %p109 = scmp.eq.s32.totalorder %s26, 3
      %p110 = por %p108, %p109
      %p112 = scmp.ne.s32.totalorder %s97, %s111
      %p113 = scmp.eq.s32.totalorder %s26, 0
      %p114 = por %p112, %p113
      %s116 = sadd.s32 %s115, 1
      %p119 = scmp.eq.s32.totalorder %s20, 3
      %p120 = scmp.ne.s32.totalorder %s115, %s117
      %p121 = scmp.eq.s32.totalorder %s20, 0
      %p122 = por %p120, %p121
      %p123 = scmp.ne.s32.totalorder %s115, %s117
      %p124 = scmp.eq.s32.totalorder %s25, 3
      %p125 = por %p123, %p124
      %p126 = scmp.ne.s32.totalorder %s117, %s118
      %p127 = scmp.eq.s32.totalorder %s25, 0
      %p128 = por %p126, %p127
      %p129 = scmp.ne.s32.totalorder %s117, %s118
      %p130 = scmp.eq.s32.totalorder %s26, 3
      %p131 = por %p129, %p130
      %p133 = scmp.ne.s32.totalorder %s118, %s132
      %p134 = scmp.eq.s32.totalorder %s26, 0
      %p135 = por %p133, %p134
      %s137 = sadd.s32 %s136, 1
      %p140 = scmp.eq.s32.totalorder %s20, 3
      %p141 = scmp.ne.s32.totalorder %s136, %s138
      %p142 = scmp.eq.s32.totalorder %s20, 0
      %p143 = por %p141, %p142
      %p144 = scmp.ne.s32.totalorder %s136, %s138
      %p145 = scmp.eq.s32.totalorder %s25, 3
      %p146 = por %p144, %p145
      %p147 = scmp.ne.s32.totalorder %s138, %s139
      %p148 = scmp.eq.s32.totalorder %s25, 0
      %p149 = por %p147, %p148
      %p150 = scmp.ne.s32.totalorder %s138, %s139
      %p151 = scmp.eq.s32.totalorder %s26, 3
      %p152 = por %p150, %p151
      %p154 = scmp.ne.s32.totalorder %s139, %s153
      %p155 = scmp.eq.s32.totalorder %s26, 0
      %p156 = por %p154, %p155
      %s158 = sadd.s32 %s157, 1
      %p161 = scmp.eq.s32.totalorder %s20, 3
      %p162 = scmp.ne.s32.totalorder %s157, %s159
      %p163 = scmp.eq.s32.totalorder %s20, 0
      %p164 = por %p162, %p163
      %p165 = scmp.ne.s32.totalorder %s157, %s159
      %p166 = scmp.eq.s32.totalorder %s25, 3
      %p167 = por %p165, %p166
      %p168 = scmp.ne.s32.totalorder %s159, %s160
      %p169 = scmp.eq.s32.totalorder %s25, 0
      %p170 = por %p168, %p169
      %p171 = scmp.ne.s32.totalorder %s159, %s160
      %p172 = scmp.eq.s32.totalorder %s26, 3
      %p173 = por %p171, %p172
      %p175 = scmp.ne.s32.totalorder %s160, %s174
      %p176 = scmp.eq.s32.totalorder %s26, 0
      %p177 = por %p175, %p176
      %s179 = sadd.s32 %s178, 1
      %p182 = scmp.eq.s32.totalorder %s20, 3
      %p183 = scmp.ne.s32.totalorder %s178, %s180
      %p184 = scmp.eq.s32.totalorder %s20, 0
      %p185 = por %p183, %p184
      %p186 = scmp.ne.s32.totalorder %s178, %s180
      %p187 = scmp.eq.s32.totalorder %s25, 3
      %p188 = por %p186, %p187
      %p189 = scmp.ne.s32.totalorder %s180, %s181
      %p190 = scmp.eq.s32.totalorder %s25, 0
      %p191 = por %p189, %p190
      %p192 = scmp.ne.s32.totalorder %s180, %s181
      %p193 = scmp.eq.s32.totalorder %s26, 3
      %p194 = por %p192, %p193
      %p196 = scmp.ne.s32.totalorder %s181, %s195
      %p197 = scmp.eq.s32.totalorder %s26, 0
      %p198 = por %p196, %p197
      %s200 = sadd.s32 %s199, 1
      %p203 = scmp.eq.s32.totalorder %s20, 3
      %p204 = scmp.ne.s32.totalorder %s199, %s201
      %p205 = scmp.eq.s32.totalorder %s20, 0
      %p206 = por %p204, %p205
      %p207 = scmp.ne.s32.totalorder %s199, %s201
      %p208 = scmp.eq.s32.totalorder %s25, 3
      %p209 = por %p207, %p208
      %p210 = scmp.ne.s32.totalorder %s201, %s202
      %p211 = scmp.eq.s32.totalorder %s25, 0
      %p212 = por %p210, %p211
      %p213 = scmp.ne.s32.totalorder %s201, %s202
      %p214 = scmp.eq.s32.totalorder %s26, 3
      %p215 = por %p213, %p214
      %p217 = scmp.ne.s32.totalorder %s202, %s216
      %p218 = scmp.eq.s32.totalorder %s26, 0
      %p219 = por %p217, %p218
      %s220 = ssub.s32 %s27, %s39
      %s221 = ssub.s32 %s28, %s35
      %s222 = sor.u32 %s220, %s221
      %p223 = scmp.eq.s32.totalorder %s222, 0
      %s225 = sadd.s32 %s224, 1
      %s226 = scalar_select %p223, %s224, %s225
      %p229 = pneg %p223
      %p230 = scmp.eq.s32.totalorder %s20, 3
      %p231 = por %p229, %p230
      %p232 = scmp.ne.s32.totalorder %s224, %s227
      %p233 = scmp.eq.s32.totalorder %s20, 0
      %p234 = por %p232, %p233
      %p235 = scmp.ne.s32.totalorder %s224, %s227
      %p236 = scmp.eq.s32.totalorder %s25, 3
      %p237 = por %p235, %p236
      %p238 = scmp.ne.s32.totalorder %s227, %s228
      %p239 = scmp.eq.s32.totalorder %s25, 0
      %p240 = por %p238, %p239
      %p241 = scmp.ne.s32.totalorder %s227, %s228
      %p242 = scmp.eq.s32.totalorder %s26, 3
      %p243 = por %p241, %p242
      %p245 = scmp.ne.s32.totalorder %s228, %s244
      %p246 = scmp.eq.s32.totalorder %s26, 0
      %p247 = por %p245, %p246
      %p248 = scmp.le.s32.totalorder 1, %s20
      %p249 = scmp.lt.s32.totalorder %s20, 5
      %p250 = pnand %p248, %p249
      %p251 = pneg %p250
      // Predicated region
      $region9: #{tpu_custom_call.1} parent=5 // pred_check
        _
      $region10: #{tpu_custom_call.1} parent=5 // pred_check_branch
        %253 = sbr.rel (%p250) target = $region12
      $region11: #{tpu_custom_call.1} parent=5 // pred_region
        %s254 = ssub.s32 %s20, 1
        // Predicated region
        $region13: #{tpu_custom_call.1} parent=11 // pred_check
          %p255 = pneg %p107
        $region14: #{tpu_custom_call.1} parent=11 // pred_check_branch
          %257 = sbr.rel (%p255) target = $region16
        $region15: #{tpu_custom_call.1} parent=11 // pred_region
          _
        $region16: #{tpu_custom_call.1} parent=11 // pred_fallthru
          _
        // Predicated region
        $region17: #{tpu_custom_call.1} parent=11 // pred_check
          %p258 = pneg %p128
        $region18: #{tpu_custom_call.1} parent=11 // pred_check_branch
          %260 = sbr.rel (%p258) target = $region20
        $region19: #{tpu_custom_call.1} parent=11 // pred_region
          _
        $region20: #{tpu_custom_call.1} parent=11 // pred_fallthru
          _
        // Predicated region
        $region21: #{tpu_custom_call.1} parent=11 // pred_check
          %p261 = pneg %p149
        $region22: #{tpu_custom_call.1} parent=11 // pred_check_branch
          %263 = sbr.rel (%p261) target = $region24
        $region23: #{tpu_custom_call.1} parent=11 // pred_region
          _
        $region24: #{tpu_custom_call.1} parent=11 // pred_fallthru
          _
        // Predicated region
        $region25: #{tpu_custom_call.1} parent=11 // pred_check
          %p264 = pneg %p170
        $region26: #{tpu_custom_call.1} parent=11 // pred_check_branch
          %266 = sbr.rel (%p264) target = $region28
        $region27: #{tpu_custom_call.1} parent=11 // pred_region
          _
        $region28: #{tpu_custom_call.1} parent=11 // pred_fallthru
          _
        // Predicated region
        $region29: #{tpu_custom_call.1} parent=11 // pred_check
          %p267 = pneg %p191
        $region30: #{tpu_custom_call.1} parent=11 // pred_check_branch
          %269 = sbr.rel (%p267) target = $region32
        $region31: #{tpu_custom_call.1} parent=11 // pred_region
          _
        $region32: #{tpu_custom_call.1} parent=11 // pred_fallthru
          _
        // Predicated region
        $region33: #{tpu_custom_call.1} parent=11 // pred_check
          %p270 = pneg %p212
        $region34: #{tpu_custom_call.1} parent=11 // pred_check_branch
          %272 = sbr.rel (%p270) target = $region36
        $region35: #{tpu_custom_call.1} parent=11 // pred_region
          _
        $region36: #{tpu_custom_call.1} parent=11 // pred_fallthru
          _
      $region12: #{tpu_custom_call.1} parent=5 // pred_fallthru
        _
      %p273 = scmp.lt.s32.totalorder %s20, 4
      // Predicated region
      $region37: #{tpu_custom_call.1} parent=5 // pred_check
        %p274 = pneg %p273
      $region38: #{tpu_custom_call.1} parent=5 // pred_check_branch
        %276 = sbr.rel (%p274) target = $region40
      $region39: #{tpu_custom_call.1} parent=5 // pred_region
        // Predicated region
        $region41: #{tpu_custom_call.1} parent=39 // pred_check
          %p277 = pneg %p52
        $region42: #{tpu_custom_call.1} parent=39 // pred_check_branch
          %279 = sbr.rel (%p277) target = $region44
        $region43: #{tpu_custom_call.1} parent=39 // pred_region
          %p280 = scmp.lt.s32.totalorder %s27, 3
          %s281 = scalar_select %p280, %s27, 3
          %s282 = smul.addr %s281, 8
          %s283 = scalar_lea.vmem %s0, %s282
        $region44: #{tpu_custom_call.1} parent=39 // pred_fallthru
          _
        // Predicated region
        $region45: #{tpu_custom_call.1} parent=39 // pred_check
          %p284 = pneg %p80
        $region46: #{tpu_custom_call.1} parent=39 // pred_check_branch
          %286 = sbr.rel (%p284) target = $region48
        $region47: #{tpu_custom_call.1} parent=39 // pred_region
          %s287 = sand.u32 %s70, 1
          %s288 = scalar_lea.sflag [#allocation3], %s287
          %s289 = sand.u32 %s70, 1
          %s290 = smul.addr %s289, 8
          %s291 = scalar_lea.vmem [#allocation2], %s290
          %s293 = ssub.s32 128, 128
          %294 = vsyncadd %s288, %s293
          %s295 = sadd.s32 %s28, %s27
          %s296 = smul.addr %s295, 128
          %s297 = scalar_lea.hbm %s1, %s296
          %s299 = sshll.u32 %s291, 4
          %s300 = int_to_ptr.vmem [resolvable:$true] %s299
          %302 = dma.hbm_to_vmem [thread:$0]  %s297, 128, %s300, %s288
        $region48: #{tpu_custom_call.1} parent=39 // pred_fallthru
          _
      $region40: #{tpu_custom_call.1} parent=5 // pred_fallthru
        _
      %p303 = scmp.le.s32.totalorder 1, %s20
      %p304 = scmp.lt.s32.totalorder %s20, 5
      %p305 = pnand %p303, %p304
      %p306 = pneg %p305
      // Predicated region
      $region49: #{tpu_custom_call.1} parent=5 // pred_check
        _
      $region50: #{tpu_custom_call.1} parent=5 // pred_check_branch
        %308 = sbr.rel (%p305) target = $region52
      $region51: #{tpu_custom_call.1} parent=5 // pred_region
        %s309 = ssub.s32 %s20, 1
        %s310 = sand.u32 %s73, 1
        %s311 = scalar_lea.sflag [#allocation3], %s310
        %s312 = sand.u32 %s73, 1
        %s313 = smul.addr %s312, 8
        %s314 = scalar_lea.vmem [#allocation2], %s313
        // Predicated region
        $region53: #{tpu_custom_call.1} parent=51 // pred_check
          %p315 = pneg %p86
        $region54: #{tpu_custom_call.1} parent=51 // pred_check_branch
          %317 = sbr.rel (%p315) target = $region56
        $region55: #{tpu_custom_call.1} parent=51 // pred_region
          %318 = dma.done %s311, 128
        $region56: #{tpu_custom_call.1} parent=51 // pred_fallthru
          _
        %p319 = scmp.lt.s32.totalorder %s29, 3
        %s320 = scalar_select %p319, %s29, 3
        %s321 = smul.addr %s320, 8
        %s322 = scalar_lea.vmem %s0, %s321
        %p323 = pneg %p58
        %p324 = pneg %p55
        %s325 = sand.u32 %s73, 1
        %s326 = scalar_lea.sflag [#allocation3], %s325
        %s327 = sand.u32 %s73, 1
        %s328 = smul.addr %s327, 8
        %s329 = scalar_lea.vmem [#allocation2], %s328
        %p330 = pneg %p86
        %p331 = pneg %p83
        %p332 = pneg %p107
        %p333 = pneg %p104
        %p334 = pneg %p128
        %p335 = pneg %p125
        %p336 = pneg %p149
        %p337 = pneg %p146
        %p338 = pneg %p170
        %p339 = pneg %p167
        %p340 = pneg %p191
        %p341 = pneg %p188
        %p342 = pneg %p212
        %p343 = pneg %p209
        %p344 = pneg %p240
        %p345 = pneg %p237
        %s346 = sand.u32 %s227, 1
        %s347 = scalar_lea.sflag [#allocation4], %s346
        %s348 = sand.u32 %s227, 1
        %s349 = smul.addr %s348, 8
        %s350 = scalar_lea.vmem [#allocation5], %s349
        %p351 = scmp.lt.s32.totalorder %s29, 3
        %s352 = scalar_select %p351, %s29, 3
        %s353 = smul.addr %s352, 8
        %s354 = scalar_lea.vmem %s0, %s353
        %v357 = vld [vmem:[%s354] sm:$0xff]
        %v358 = vpack.c.bf16 %v357, %v357
        %v359 = vld [vmem:[%s314] sm:$0xff]
        %v360 = vpack.c.bf16 %v359, %v359
        %v361 = vld [vmem:[%s2] sm:$0xf]
        %v362 = vld [vmem:[%s2 + $0x4] sm:$0xf]
        %v363 = vld [vmem:[%s3] sm:$0xff]
        %v364 = vld [vmem:[%s3 + $0x8] sm:$0xff]
        %366 = vset.pattern.permute.xlu0 0
        %367 = vperm.xlu0 %366, %v363
        %v368 = vpop.permute.xlu0 %367
        %371 = vset.pattern.permute.xlu0 0
        %372 = vperm.xlu0 %371, %v364
        %v373 = vpop.permute.xlu0 %372
        %v377 = vunpack.c.l.b16 %v361
        %v378 = vunpack.c.l.b16 %v362
        %v379 = vpack.c.b16 %v378, %v377
        %vm380 = vcmask 64512
        %v382 = vsel %vm380, %v379, 0
        %vm384 = vcmask 1043456
        %v386 = vsel %vm384, %v360, 0
        %388 = vmatprep.subr.bf16.mxu0 0
        %389 = vmatpush1.bf16.msra.mxu0 %v386
        %390 = vmatprep.subr.bf16.mxu0 0
        %391 = vmatpush1.bf16.msra.mxu0 0
        %392 = vmatprep.subr.bf16.mxu0 0
        %393 = vmatpush1.bf16.msra.mxu0 0
        %394 = vmatprep.subr.bf16.mxu0 0
        %395 = vmatpush1.bf16.msra.mxu0 0
        %396 = vmatprep.subr.bf16.mxu0 0
        %397 = vmatpush1.bf16.msra.mxu0 0
        %398 = vmatprep.subr.bf16.mxu0 0
        %399 = vmatpush1.bf16.msra.mxu0 0
        %400 = vmatprep.subr.bf16.mxu0 0
        %401 = vmatpush1.bf16.msra.mxu0 0
        %402 = vmatprep.subr.bf16.mxu0 0
        %403 = vmatpush1.bf16.msra.mxu0 0
        %404 = vmatprep.subr.bf16.mxu0 0
        %405 = vmatpush1.bf16.msra.mxu0 0
        %406 = vmatprep.subr.bf16.mxu0 0
        %407 = vmatpush1.bf16.msra.mxu0 0
        %408 = vmatprep.subr.bf16.mxu0 0
        %409 = vmatpush1.bf16.msra.mxu0 0
        %410 = vmatprep.subr.bf16.mxu0 0
        %411 = vmatpush1.bf16.msra.mxu0 0
        %412 = vmatprep.subr.bf16.mxu0 0
        %413 = vmatpush1.bf16.msra.mxu0 0
        %414 = vmatprep.subr.bf16.mxu0 0
        %415 = vmatpush1.bf16.msra.mxu0 0
        %416 = vmatprep.subr.bf16.mxu0 0
        %417 = vmatpush1.bf16.msra.mxu0 0
        %418 = vmatprep.subr.bf16.mxu0 0
        %419 = vmatpush1.bf16.msra.mxu0 0
        %420 = vmatprep.mubr.bf16.mxu0 0
        %421 = vmatmul.mubr.bf16.gmra.mrb[0].mxu0 %v382
        %v422 = vpop.f32.mrb[0].mxu0
        %v423 = vadd.f32 %v368, %v422
        %v424 = vpop.f32.mrb[0].mxu0
        %v425 = vpop.f32.mrb[0].mxu0
        %v426 = vadd.f32 %v373, %v425
        %v427 = vpop.f32.mrb[0].mxu0
        %428 = vdwg.mxu0
        %v429 = vld [vmem:[%s4] sm:$0xf]
        %v430 = vld [vmem:[%s4 + $0x4] sm:$0xf]
        %v431 = vld [vmem:[%s5] sm:$0xff]
        %v432 = vld [vmem:[%s5 + $0x8] sm:$0xff]
        %434 = vset.pattern.permute.xlu0 0
        %435 = vperm.xlu0 %434, %v431
        %v436 = vpop.permute.xlu0 %435
        %439 = vset.pattern.permute.xlu0 0
        %440 = vperm.xlu0 %439, %v432
        %v441 = vpop.permute.xlu0 %440
        %v445 = vunpack.c.l.b16 %v429
        %v446 = vunpack.c.l.b16 %v430
        %v447 = vpack.c.b16 %v446, %v445
        %v449 = vsel %vm380, %v447, 0
        %v452 = vsel %vm384, %v358, 0
        %454 = vmatprep.subr.bf16.mxu0 0
        %455 = vmatpush1.bf16.msra.mxu0 %v452
        %456 = vmatprep.subr.bf16.mxu0 0
        %457 = vmatpush1.bf16.msra.mxu0 0
        %458 = vmatprep.subr.bf16.mxu0 0
        %459 = vmatpush1.bf16.msra.mxu0 0
        %460 = vmatprep.subr.bf16.mxu0 0
        %461 = vmatpush1.bf16.msra.mxu0 0
        %462 = vmatprep.subr.bf16.mxu0 0
        %463 = vmatpush1.bf16.msra.mxu0 0
        %464 = vmatprep.subr.bf16.mxu0 0
        %465 = vmatpush1.bf16.msra.mxu0 0
        %466 = vmatprep.subr.bf16.mxu0 0
        %467 = vmatpush1.bf16.msra.mxu0 0
        %468 = vmatprep.subr.bf16.mxu0 0
        %469 = vmatpush1.bf16.msra.mxu0 0
        %470 = vmatprep.subr.bf16.mxu0 0
        %471 = vmatpush1.bf16.msra.mxu0 0
        %472 = vmatprep.subr.bf16.mxu0 0
        %473 = vmatpush1.bf16.msra.mxu0 0
        %474 = vmatprep.subr.bf16.mxu0 0
        %475 = vmatpush1.bf16.msra.mxu0 0
        %476 = vmatprep.subr.bf16.mxu0 0
        %477 = vmatpush1.bf16.msra.mxu0 0
        %478 = vmatprep.subr.bf16.mxu0 0
        %479 = vmatpush1.bf16.msra.mxu0 0
        %480 = vmatprep.subr.bf16.mxu0 0
        %481 = vmatpush1.bf16.msra.mxu0 0
        %482 = vmatprep.subr.bf16.mxu0 0
        %483 = vmatpush1.bf16.msra.mxu0 0
        %484 = vmatprep.subr.bf16.mxu0 0
        %485 = vmatpush1.bf16.msra.mxu0 0
        %486 = vmatprep.mubr.bf16.mxu0 0
        %487 = vmatmul.mubr.bf16.gmra.mrb[0].mxu0 %v449
        %v488 = vpop.f32.mrb[0].mxu0
        %v489 = vadd.f32 %v436, %v488
        %v490 = vpop.f32.mrb[0].mxu0
        %v491 = vpop.f32.mrb[0].mxu0
        %v492 = vadd.f32 %v441, %v491
        %v493 = vpop.f32.mrb[0].mxu0
        %494 = vdwg.mxu0
        %v495 = vpack.c.bf16 %v426, %v423
        %v496 = vpack.c.bf16 %v492, %v489
        %497 = vxpose.xlu0.c.b16.start [1/8] %v495, 128
        %498 = vxpose.xlu0.c.b16.cont [2/8] 0, 128
        %499 = vxpose.xlu0.c.b16.cont [3/8] 0, 128
        %500 = vxpose.xlu0.c.b16.cont [4/8] 0, 128
        %501 = vxpose.xlu0.c.b16.cont [5/8] 0, 128
        %502 = vxpose.xlu0.c.b16.cont [6/8] 0, 128
        %503 = vxpose.xlu0.c.b16.cont [7/8] 0, 128
        %504 = vxpose.xlu0.c.b16.end [8/8] 0, 128
        %v505 = vpop.trf.xlu0
        %v506 = vpop.trf.xlu0
        %v507 = vpop.trf.xlu0
        %v508 = vpop.trf.xlu0
        %v509 = vpop.trf.xlu0
        %v510 = vpop.trf.xlu0
        %v511 = vpop.trf.xlu0
        %v512 = vpop.trf.xlu0
        %vm513 = vcmask 130048
        %v515 = vsel %vm513, %v505, 0
        %v518 = vsel %vm513, %v506, 0
        %v521 = vsel %vm513, %v507, 0
        %v524 = vsel %vm513, %v508, 0
        %v527 = vsel %vm513, %v509, 0
        %v530 = vsel %vm513, %v510, 0
        %v533 = vsel %vm513, %v511, 0
        %v536 = vsel %vm513, %v512, 0
        %538 = vmatprep.subr.bf16.mxu0 0
        %539 = vmatpush1.bf16.msra.mxu0 %v496
        %540 = vmatprep.subr.bf16.mxu0 0
        %541 = vmatpush1.bf16.msra.mxu0 0
        %542 = vmatprep.subr.bf16.mxu0 0
        %543 = vmatpush1.bf16.msra.mxu0 0
        %544 = vmatprep.subr.bf16.mxu0 0
        %545 = vmatpush1.bf16.msra.mxu0 0
        %546 = vmatprep.subr.bf16.mxu0 0
        %547 = vmatpush1.bf16.msra.mxu0 0
        %548 = vmatprep.subr.bf16.mxu0 0
        %549 = vmatpush1.bf16.msra.mxu0 0
        %550 = vmatprep.subr.bf16.mxu0 0
        %551 = vmatpush1.bf16.msra.mxu0 0
        %552 = vmatprep.subr.bf16.mxu0 0
        %553 = vmatpush1.bf16.msra.mxu0 0
        %554 = vmatprep.subr.bf16.mxu0 0
        %555 = vmatpush1.bf16.msra.mxu0 0
        %556 = vmatprep.subr.bf16.mxu0 0
        %557 = vmatpush1.bf16.msra.mxu0 0
        %558 = vmatprep.subr.bf16.mxu0 0
        %559 = vmatpush1.bf16.msra.mxu0 0
        %560 = vmatprep.subr.bf16.mxu0 0
        %561 = vmatpush1.bf16.msra.mxu0 0
        %562 = vmatprep.subr.bf16.mxu0 0
        %563 = vmatpush1.bf16.msra.mxu0 0
        %564 = vmatprep.subr.bf16.mxu0 0
        %565 = vmatpush1.bf16.msra.mxu0 0
        %566 = vmatprep.subr.bf16.mxu0 0
        %567 = vmatpush1.bf16.msra.mxu0 0
        %568 = vmatprep.subr.bf16.mxu0 0
        %569 = vmatpush1.bf16.msra.mxu0 0
        %570 = vmatprep.mubr.bf16.mxu0 0
        %571 = vmatmul.mubr.bf16.gmra.mrb[0].mxu0 %v515
        %v572 = vpop.f32.mrb[0].mxu0
        %v573 = vadd.f32 0.0, %v572
        %v574 = vpop.f32.mrb[0].mxu0
        %v575 = vpop.f32.mrb[0].mxu0
        %v576 = vadd.f32 0.0, %v575
        %v577 = vpop.f32.mrb[0].mxu0
        %578 = vmatprep.mubr.bf16.mxu0 0
        %579 = vmatmul.mubr.bf16.gmra.mrb[0].mxu0 %v518
        %v580 = vpop.f32.mrb[0].mxu0
        %v581 = vadd.f32 0.0, %v580
        %v582 = vpop.f32.mrb[0].mxu0
        %v583 = vpop.f32.mrb[0].mxu0
        %v584 = vadd.f32 0.0, %v583
        %v585 = vpop.f32.mrb[0].mxu0
        %586 = vmatprep.mubr.bf16.mxu0 0
        %587 = vmatmul.mubr.bf16.gmra.mrb[0].mxu0 %v521
        %v588 = vpop.f32.mrb[0].mxu0
        %v589 = vadd.f32 0.0, %v588
        %v590 = vpop.f32.mrb[0].mxu0
        %v591 = vpop.f32.mrb[0].mxu0
        %v592 = vadd.f32 0.0, %v591
        %v593 = vpop.f32.mrb[0].mxu0
        %594 = vmatprep.mubr.bf16.mxu0 0
        %595 = vmatmul.mubr.bf16.gmra.mrb[0].mxu0 %v524
        %v596 = vpop.f32.mrb[0].mxu0
        %v597 = vadd.f32 0.0, %v596
        %v598 = vpop.f32.mrb[0].mxu0
        %v599 = vpop.f32.mrb[0].mxu0
        %v600 = vadd.f32 0.0, %v599
        %v601 = vpop.f32.mrb[0].mxu0
        %602 = vmatprep.mubr.bf16.mxu0 0
        %603 = vmatmul.mubr.bf16.gmra.mrb[0].mxu0 %v527
        %v604 = vpop.f32.mrb[0].mxu0
        %v605 = vadd.f32 0.0, %v604
        %v606 = vpop.f32.mrb[0].mxu0
        %v607 = vpop.f32.mrb[0].mxu0
        %v608 = vadd.f32 0.0, %v607
        %v609 = vpop.f32.mrb[0].mxu0
        %610 = vmatprep.mubr.bf16.mxu0 0
        %611 = vmatmul.mubr.bf16.gmra.mrb[0].mxu0 %v530
        %v612 = vpop.f32.mrb[0].mxu0
        %v613 = vadd.f32 0.0, %v612
        %v614 = vpop.f32.mrb[0].mxu0
        %v615 = vpop.f32.mrb[0].mxu0
        %v616 = vadd.f32 0.0, %v615
        %v617 = vpop.f32.mrb[0].mxu0
        %618 = vmatprep.mubr.bf16.mxu0 0
        %619 = vmatmul.mubr.bf16.gmra.mrb[0].mxu0 %v533
        %v620 = vpop.f32.mrb[0].mxu0
        %v621 = vadd.f32 0.0, %v620
        %v622 = vpop.f32.mrb[0].mxu0
        %v623 = vpop.f32.mrb[0].mxu0
        %v624 = vadd.f32 0.0, %v623
        %v625 = vpop.f32.mrb[0].mxu0
        %626 = vmatprep.mubr.bf16.mxu0 0
        %627 = vmatmul.mubr.bf16.gmra.mrb[0].mxu0 %v536
        %v628 = vpop.f32.mrb[0].mxu0
        %v629 = vadd.f32 0.0, %v628
        %v630 = vpop.f32.mrb[0].mxu0
        %v631 = vpop.f32.mrb[0].mxu0
        %v632 = vadd.f32 0.0, %v631
        %v633 = vpop.f32.mrb[0].mxu0
        %634 = vdwg.mxu0
        %635 = vmax.xlane.f32.xlu0 %v573
        %v636 = vpop.xlane.xlu0 %635
        %637 = vmax.xlane.f32.xlu0 %v576
        %v638 = vpop.xlane.xlu0 %637
        %639 = vmax.xlane.f32.xlu0 %v581
        %v640 = vpop.xlane.xlu0 %639
        %641 = vmax.xlane.f32.xlu0 %v584
        %v642 = vpop.xlane.xlu0 %641
        %643 = vmax.xlane.f32.xlu0 %v589
        %v644 = vpop.xlane.xlu0 %643
        %645 = vmax.xlane.f32.xlu0 %v592
        %v646 = vpop.xlane.xlu0 %645
        %647 = vmax.xlane.f32.xlu0 %v597
        %v648 = vpop.xlane.xlu0 %647
        %649 = vmax.xlane.f32.xlu0 %v600
        %v650 = vpop.xlane.xlu0 %649
        %651 = vmax.xlane.f32.xlu0 %v605
        %v652 = vpop.xlane.xlu0 %651
        %653 = vmax.xlane.f32.xlu0 %v608
        %v654 = vpop.xlane.xlu0 %653
        %655 = vmax.xlane.f32.xlu0 %v613
        %v656 = vpop.xlane.xlu0 %655
        %657 = vmax.xlane.f32.xlu0 %v616
        %v658 = vpop.xlane.xlu0 %657
        %659 = vmax.xlane.f32.xlu0 %v621
        %v660 = vpop.xlane.xlu0 %659
        %661 = vmax.xlane.f32.xlu0 %v624
        %v662 = vpop.xlane.xlu0 %661
        %663 = vmax.xlane.f32.xlu0 %v629
        %v664 = vpop.xlane.xlu0 %663
        %665 = vmax.xlane.f32.xlu0 %v632
        %v666 = vpop.xlane.xlu0 %665
        %v667 = vsub.f32 %v573, %v636
        %v668 = vsub.f32 %v576, %v638
        %v669 = vsub.f32 %v581, %v640
        %v670 = vsub.f32 %v584, %v642
        %v671 = vsub.f32 %v589, %v644
        %v672 = vsub.f32 %v592, %v646
        %v673 = vsub.f32 %v597, %v648
        %v674 = vsub.f32 %v600, %v650
        %v675 = vsub.f32 %v605, %v652
        %v676 = vsub.f32 %v608, %v654
        %v677 = vsub.f32 %v613, %v656
        %v678 = vsub.f32 %v616, %v658
        %v679 = vsub.f32 %v621, %v660
        %v680 = vsub.f32 %v624, %v662
        %v681 = vsub.f32 %v629, %v664
        %v682 = vsub.f32 %v632, %v666
        %v683 = vmul.f32 %v667, 1.442695
        %v684 = vpow.pop %v683
        %v685 = vmul.f32 %v668, 1.442695
        %v686 = vpow.pop %v685
        %v687 = vmul.f32 %v669, 1.442695
        %v688 = vpow.pop %v687
        %v689 = vmul.f32 %v670, 1.442695
        %v690 = vpow.pop %v689
        %v691 = vmul.f32 %v671, 1.442695
        %v692 = vpow.pop %v691
        %v693 = vmul.f32 %v672, 1.442695
        %v694 = vpow.pop %v693
        %v695 = vmul.f32 %v673, 1.442695
        %v696 = vpow.pop %v695
        %v697 = vmul.f32 %v674, 1.442695
        %v698 = vpow.pop %v697
        %v699 = vmul.f32 %v675, 1.442695
        %v700 = vpow.pop %v699
        %v701 = vmul.f32 %v676, 1.442695
        %v702 = vpow.pop %v701
        %v703 = vmul.f32 %v677, 1.442695
        %v704 = vpow.pop %v703
        %v705 = vmul.f32 %v678, 1.442695
        %v706 = vpow.pop %v705
        %v707 = vmul.f32 %v679, 1.442695
        %v708 = vpow.pop %v707
        %v709 = vmul.f32 %v680, 1.442695
        %v710 = vpow.pop %v709
        %v711 = vmul.f32 %v681, 1.442695
        %v712 = vpow.pop %v711
        %v713 = vmul.f32 %v682, 1.442695
        %v714 = vpow.pop %v713
        %v715 = vpack.c.bf16 %v686, %v684
        %v716 = vpack.c.bf16 %v690, %v688
        %v717 = vpack.c.bf16 %v694, %v692
        %v718 = vpack.c.bf16 %v698, %v696
        %v719 = vpack.c.bf16 %v702, %v700
        %v720 = vpack.c.bf16 %v706, %v704
        %v721 = vpack.c.bf16 %v710, %v708
        %v722 = vpack.c.bf16 %v714, %v712
        %v723 = vld [vmem:[%s6] sm:$0xf]
        %v725 = vsel %vm380, %v723, 0
        %727 = vmatprep.subr.bf16.mxu0 0
        %728 = vmatpush1.bf16.msra.mxu0 %v452
        %729 = vmatprep.subr.bf16.mxu0 0
        %730 = vmatpush1.bf16.msra.mxu0 0
        %731 = vmatprep.subr.bf16.mxu0 0
        %732 = vmatpush1.bf16.msra.mxu0 0
        %733 = vmatprep.subr.bf16.mxu0 0
        %734 = vmatpush1.bf16.msra.mxu0 0
        %735 = vmatprep.subr.bf16.mxu0 0
        %736 = vmatpush1.bf16.msra.mxu0 0
        %737 = vmatprep.subr.bf16.mxu0 0
        %738 = vmatpush1.bf16.msra.mxu0 0
        %739 = vmatprep.subr.bf16.mxu0 0
        %740 = vmatpush1.bf16.msra.mxu0 0
        %741 = vmatprep.subr.bf16.mxu0 0
        %742 = vmatpush1.bf16.msra.mxu0 0
        %743 = vmatprep.subr.bf16.mxu0 0
        %744 = vmatpush1.bf16.msra.mxu0 0
        %745 = vmatprep.subr.bf16.mxu0 0
        %746 = vmatpush1.bf16.msra.mxu0 0
        %747 = vmatprep.subr.bf16.mxu0 0
        %748 = vmatpush1.bf16.msra.mxu0 0
        %749 = vmatprep.subr.bf16.mxu0 0
        %750 = vmatpush1.bf16.msra.mxu0 0
        %751 = vmatprep.subr.bf16.mxu0 0
        %752 = vmatpush1.bf16.msra.mxu0 0
        %753 = vmatprep.subr.bf16.mxu0 0
        %754 = vmatpush1.bf16.msra.mxu0 0
        %755 = vmatprep.subr.bf16.mxu0 0
        %756 = vmatpush1.bf16.msra.mxu0 0
        %757 = vmatprep.subr.bf16.mxu0 0
        %758 = vmatpush1.bf16.msra.mxu0 0
        %759 = vmatprep.mubr.bf16.mxu0 0
        %760 = vmatmul.mubr.bf16.gmra.mrb[0].mxu0 %v725
        %v761 = vpop.f32.mrb[0].mxu0
        %v762 = vadd.f32 0.0, %v761
        %v763 = vpop.f32.mrb[0].mxu0
        %v764 = vpop.f32.mrb[0].mxu0
        %v765 = vpop.f32.mrb[0].mxu0
        %766 = vdwg.mxu0
        %v767 = vpack.c.bf16 %v762, %v762
        %768 = vmatprep.subr.bf16.mxu0 0
        %769 = vmatpush1.bf16.xpose.msra.mxu0 %v715
        %770 = vmatprep.subr.bf16.mxu0 0
        %771 = vmatpush1.bf16.xpose.msra.mxu0 %v716
        %772 = vmatprep.subr.bf16.mxu0 0
        %773 = vmatpush1.bf16.xpose.msra.mxu0 %v717
        %774 = vmatprep.subr.bf16.mxu0 0
        %775 = vmatpush1.bf16.xpose.msra.mxu0 %v718
        %776 = vmatprep.subr.bf16.mxu0 0
        %777 = vmatpush1.bf16.xpose.msra.mxu0 %v719
        %778 = vmatprep.subr.bf16.mxu0 0
        %779 = vmatpush1.bf16.xpose.msra.mxu0 %v720
        %780 = vmatprep.subr.bf16.mxu0 0
        %781 = vmatpush1.bf16.xpose.msra.mxu0 %v721
        %782 = vmatprep.subr.bf16.mxu0 0
        %783 = vmatpush1.bf16.xpose.msra.mxu0 %v722
        %784 = vmatprep.subr.bf16.mxu0 0
        %785 = vmatpush1.bf16.xpose.msra.mxu0 0
        %786 = vmatprep.subr.bf16.mxu0 0
        %787 = vmatpush1.bf16.xpose.msra.mxu0 0
        %788 = vmatprep.subr.bf16.mxu0 0
        %789 = vmatpush1.bf16.xpose.msra.mxu0 0
        %790 = vmatprep.subr.bf16.mxu0 0
        %791 = vmatpush1.bf16.xpose.msra.mxu0 0
        %792 = vmatprep.subr.bf16.mxu0 0
        %793 = vmatpush1.bf16.xpose.msra.mxu0 0
        %794 = vmatprep.subr.bf16.mxu0 0
        %795 = vmatpush1.bf16.xpose.msra.mxu0 0
        %796 = vmatprep.subr.bf16.mxu0 0
        %797 = vmatpush1.bf16.xpose.msra.mxu0 0
        %798 = vmatprep.subr.bf16.mxu0 0
        %799 = vmatpush1.bf16.xpose.msra.mxu0 0
        %800 = vmatprep.mubr.bf16.mxu0 0
        %801 = vmatmul.mubr.bf16.gmra.mrb[0].mxu0 %v767
        %v802 = vpop.f32.mrb[0].mxu0
        %v803 = vadd.f32 0.0, %v802
        %v804 = vpop.f32.mrb[0].mxu0
        %v805 = vpop.f32.mrb[0].mxu0
        %v806 = vpop.f32.mrb[0].mxu0
        %807 = vdwg.mxu0
        %808 = vmatprep.subr.bf16.mxu0 0
        %809 = vmatpush1.bf16.xpose.msra.mxu0 %v715
        %810 = vmatprep.subr.bf16.mxu0 0
        %811 = vmatpush1.bf16.xpose.msra.mxu0 %v716
        %812 = vmatprep.subr.bf16.mxu0 0
        %813 = vmatpush1.bf16.xpose.msra.mxu0 %v717
        %814 = vmatprep.subr.bf16.mxu0 0
        %815 = vmatpush1.bf16.xpose.msra.mxu0 %v718
        %816 = vmatprep.subr.bf16.mxu0 0
        %817 = vmatpush1.bf16.xpose.msra.mxu0 %v719
        %818 = vmatprep.subr.bf16.mxu0 0
        %819 = vmatpush1.bf16.xpose.msra.mxu0 %v720
        %820 = vmatprep.subr.bf16.mxu0 0
        %821 = vmatpush1.bf16.xpose.msra.mxu0 %v721
        %822 = vmatprep.subr.bf16.mxu0 0
        %823 = vmatpush1.bf16.xpose.msra.mxu0 %v722
        %824 = vmatprep.subr.bf16.mxu0 0
        %825 = vmatpush1.bf16.xpose.msra.mxu0 0
        %826 = vmatprep.subr.bf16.mxu0 0
        %827 = vmatpush1.bf16.xpose.msra.mxu0 0
        %828 = vmatprep.subr.bf16.mxu0 0
        %829 = vmatpush1.bf16.xpose.msra.mxu0 0
        %830 = vmatprep.subr.bf16.mxu0 0
        %831 = vmatpush1.bf16.xpose.msra.mxu0 0
        %832 = vmatprep.subr.bf16.mxu0 0
        %833 = vmatpush1.bf16.xpose.msra.mxu0 0
        %834 = vmatprep.subr.bf16.mxu0 0
        %835 = vmatpush1.bf16.xpose.msra.mxu0 0
        %836 = vmatprep.subr.bf16.mxu0 0
        %837 = vmatpush1.bf16.xpose.msra.mxu0 0
        %838 = vmatprep.subr.bf16.mxu0 0
        %839 = vmatpush1.bf16.xpose.msra.mxu0 0
        %840 = vmatprep.mubr.bf16.mxu0 0
        %841 = vmatmul.mubr.bf16.gmra.mrb[0].mxu0 1065369472
        %v842 = vpop.f32.mrb[0].mxu0
        %v843 = vadd.f32 0.0, %v842
        %v844 = vpop.f32.mrb[0].mxu0
        %v845 = vpop.f32.mrb[0].mxu0
        %v846 = vpop.f32.mrb[0].mxu0
        %847 = vdwg.mxu0
        %v848 = vrcp.pop %v843
        %v849 = vlaneseq
        %v850 = vshrl.u32 %v849, 7
        %v851 = vsub.s32 0, %v850
        %v852 = vrot.slane %v848, %v851
        %v853 = vmul.f32 %v803, %v852
        %v854 = vadd.f32 %v359, %v853
        %v855 = vld [vmem:[%s7] sm:$0xff]
        %857 = vset.pattern.permute.xlu0 0
        %858 = vperm.xlu0 %857, %v855
        %v859 = vpop.permute.xlu0 %858
        %v861 = vadd.f32 %v854, %v859
        %862 = vst [vmem:[%s350] sm:$0xff] %v861
        %s863 = sand.u32 %s227, 1
        %s864 = scalar_lea.sflag [#allocation4], %s863
        %s865 = sand.u32 %s227, 1
        %s866 = smul.addr %s865, 8
        %s867 = scalar_lea.vmem [#allocation5], %s866
        // Predicated region
        $region57: #{tpu_custom_call.1} parent=51 // pred_check
          %p868 = pneg %p237
        $region58: #{tpu_custom_call.1} parent=51 // pred_check_branch
          %870 = sbr.rel (%p868) target = $region60
        $region59: #{tpu_custom_call.1} parent=51 // pred_region
          %s872 = ssub.s32 128, 128
          %873 = vsyncadd %s864, %s872
          %s874 = sadd.s32 %s30, %s29
          %s875 = smul.addr %s874, 128
          %s876 = scalar_lea.hbm %s8, %s875
          %s878 = sshll.u32 %s867, 4
          %s879 = int_to_ptr.vmem [resolvable:$true] %s878
          %881 = dma.vmem_to_hbm [thread:$0]  %s879, 128, %s876, %s864
        $region60: #{tpu_custom_call.1} parent=51 // pred_fallthru
          _
      $region52: #{tpu_custom_call.1} parent=5 // pred_fallthru
        _
      %p882 = scmp.le.s32.totalorder 2, %s20
      // Predicated region
      $region61: #{tpu_custom_call.1} parent=5 // pred_check
        %p883 = pneg %p882
      $region62: #{tpu_custom_call.1} parent=5 // pred_check_branch
        %885 = sbr.rel (%p883) target = $region64
      $region63: #{tpu_custom_call.1} parent=5 // pred_region
        %s886 = ssub.s32 %s20, 2
        // Predicated region
        $region65: #{tpu_custom_call.1} parent=63 // pred_check
          %p887 = pneg %p243
        $region66: #{tpu_custom_call.1} parent=63 // pred_check_branch
          %889 = sbr.rel (%p887) target = $region68
        $region67: #{tpu_custom_call.1} parent=63 // pred_region
          %s890 = sand.u32 %s228, 1
          %s891 = scalar_lea.sflag [#allocation4], %s890
          %s892 = sand.u32 %s228, 1
          %s893 = smul.addr %s892, 8
          %s894 = scalar_lea.vmem [#allocation5], %s893
          %895 = dma.done %s891, 128
        $region68: #{tpu_custom_call.1} parent=63 // pred_fallthru
          _
      $region64: #{tpu_custom_call.1} parent=5 // pred_fallthru
        _
    $region6: #{tpu_custom_call.1} parent=1 // loop_footer
      %s24 = sadd.s32 1, %s20
    $region7: #{tpu_custom_call.1} parent=1 // loop_footer_branch
      %19 = sbr.rel target = $region3
    $region8: #{tpu_custom_call.1} parent=1 // loop_exit
      _
    %896 = vsyncpa [#allocation3], 1
    %s897 = scalar_lea.sflag [#allocation3], 1
    %898 = vsyncpa %s897, 1
    %899 = vsyncpa [#allocation4], 1
    %s900 = scalar_lea.sflag [#allocation4], 1
    %901 = vsyncpa %s900, 1

</llo_original>
